<compile_context>
chip_gen: v5e
topology: v5e:2x2
jax: 0.10.0
libtpu: 0.0.40
codegen_flags: <defaults>
</compile_context>

<pallas_src>
import functools
import math

import jax
import jax.numpy as jnp
from jax.experimental import pallas as pl
from jax.experimental.pallas import tpu as pltpu


# ---------------------------------------------------------------------------
# Kernel 1: fused QKV projection.
#   x_flat(B*N, DIM) @ W_qkv^T(DIM, 3*DIM) -> three (B*N, DIM) bf16 outputs.
# Weights are pre-transposed & concatenated in the wrapper (no in-kernel
# transpose); bf16 MXU inputs with f32 accumulation; three lane-dense stores.
# ---------------------------------------------------------------------------
def _qkv_proj_kernel(x_ref, wt_ref, q_ref, k_ref, v_ref, *, dim):
    y = jnp.dot(x_ref[...].astype(wt_ref.dtype), wt_ref[...],
                preferred_element_type=jnp.float32)
    q_ref[...] = y[:, :dim].astype(q_ref.dtype)
    k_ref[...] = y[:, dim:2 * dim].astype(k_ref.dtype)
    v_ref[...] = y[:, 2 * dim:].astype(v_ref.dtype)


# ---------------------------------------------------------------------------
# Kernel 2: head-batched attention over a (batch, q-block, key-block) grid.
# ---------------------------------------------------------------------------
def _attention_kernel(q_ref, k_ref, v_ref, o_ref,
                      qh_ref, kh_ref, vh_ref, acc_ref, *,
                      num_heads, head_dim, seq_len, block_k, inv_sqrt_dim):
    H, dh = num_heads, head_dim
    ki = pl.program_id(2)

    # New (batch, q-block): reset the accumulator and stage Q head-leading.
    # (Scratch persists across the key-block sweep, so this runs once per
    # (b, q-block) -- the Q block itself is revisited along ki.)
    @pl.when(ki == 0)
    def _():
        acc_ref[...] = jnp.zeros_like(acc_ref)
        q = q_ref[0]                                   # (tq, H*dh) bf16
        for h in range(H):                             # static slice copies
            qh_ref[h] = q[:, h * dh:(h + 1) * dh]

    # Stage this key block head-leading.  Zero padded key rows of the last
    # block so they contribute exactly 0 to the accumulation (the head-axis
    # softmax is per (q, k), so extra key columns never influence valid ones).
    k = k_ref[0]                                       # (tk, H*dh) bf16
    v = v_ref[0]
    if seq_len % block_k != 0:
        rows = jax.lax.broadcasted_iota(jnp.int32, (block_k, 1), 0)
        valid = (ki * block_k + rows) < seq_len
        k = jnp.where(valid, k, 0)
        v = jnp.where(valid, v, 0)
    for h in range(H):                                 # static slice copies
        kh_ref[h] = k[:, h * dh:(h + 1) * dh]
        vh_ref[h] = v[:, h * dh:(h + 1) * dh]

    # All heads in one batched MXU contraction: (H, tq, tk) f32 scores.
    # dh (< 128) inherently under-fills the MXU contraction depth; we keep
    # the non-contraction tiles (tq, tk) large and 128-aligned instead.
    s = jnp.einsum('hqd,hkd->hqk', qh_ref[...], kh_ref[...],
                   preferred_element_type=jnp.float32)

    # NOTE: intentionally matches the PyTorch module -- softmax is over the
    # *head* axis (dim=1 of (b,h,q,k)) and the 1/sqrt(dim) scale is applied
    # AFTER the softmax.  Do not "fix" this to a key-axis softmax.
    m = jnp.max(s, axis=0, keepdims=True)
    e = jnp.exp(s - m)
    denom = jnp.sum(e, axis=0, keepdims=True)          # >= 1 -> approx recip safe
    p = e * (pl.reciprocal(denom, approx=True) * inv_sqrt_dim)

    # Weighted sum over this key block for all heads at once, f32 accumulate.
    acc_ref[...] += jnp.einsum('hqk,hkd->hqd', p.astype(vh_ref.dtype),
                               vh_ref[...], preferred_element_type=jnp.float32)

    # Finalize: fused head merge -> one lane-dense (1, tq, DIM) block in
    # x.dtype.  Rows past seq_len are dropped by Pallas' masked writeback.
    @pl.when(ki == pl.num_programs(2) - 1)
    def _():
        for h in range(H):                             # static lane-slice stores
            o_ref[0, :, h * dh:(h + 1) * dh] = acc_ref[h].astype(o_ref.dtype)


@functools.partial(jax.jit, static_argnames=("num_heads",))
def multi_head_attention(x, wq, wk, wv, *, num_heads):
    """x: (B, N, DIM); wq/wk/wv: (DIM, DIM) PyTorch nn.Linear weights (out, in)."""
    B, N, DIM = x.shape
    H = num_heads
    dh = DIM // H
    assert H * dh == DIM

    compute_dtype = jnp.bfloat16  # MXU inputs; accumulation stays f32.

    # Pre-transpose + fuse the projection weights -> (DIM, 3*DIM), (in, out).
    w_qkv_t = jnp.concatenate([wq.T, wk.T, wv.T], axis=1).astype(compute_dtype)

    # ---- Kernel 1: fused QKV projection over flattened rows (B*N, DIM). ----
    M = B * N
    x_flat = x.reshape(M, DIM)        # cast to bf16 happens inside the kernel
    tm = M if M <= 256 else 256       # 256 fills the 256-wide v6e/v7x MXU;
                                      # on v5e it just amortizes step overhead.

    proj_spec = pl.BlockSpec((tm, DIM), lambda i: (i, 0))
    q2, k2, v2 = pl.pallas_call(
        functools.partial(_qkv_proj_kernel, dim=DIM),
        out_shape=[jax.ShapeDtypeStruct((M, DIM), compute_dtype)] * 3,
        grid=(pl.cdiv(M, tm),),
        in_specs=[
            pl.BlockSpec((tm, DIM), lambda i: (i, 0)),
            # Revisited operand (constant index_map); single-buffer it with
            # pipeline_mode=pl.Buffered(buffer_count=1) if VMEM-bound.
            pl.BlockSpec((DIM, 3 * DIM), lambda i: (0, 0)),
        ],
        out_specs=[proj_spec, proj_spec, proj_spec],
        compiler_params=pltpu.CompilerParams(
            dimension_semantics=("parallel",),
            vmem_limit_bytes=32 * 1024 * 1024),
    )(x_flat, w_qkv_t)

    # Free reshapes only (row-major split of the leading axis) -- the old
    # full-tensor XLA head-split transpose is gone.
    q3 = q2.reshape(B, N, DIM)
    k3 = k2.reshape(B, N, DIM)
    v3 = v2.reshape(B, N, DIM)

    # ---- Kernel 2: key-tiled, head-batched attention; fused head merge. ----
    tq = N if N <= 128 else 128       # 128 keeps v7x (64 MiB VMEM) headroom;
                                      # bump to 256 on v6e if MXU has slack.
    tk = N if N <= 512 else 512       # key-block size (reduction axis, last).

    kernel = functools.partial(
        _attention_kernel, num_heads=H, head_dim=dh, seq_len=N,
        block_k=tk, inv_sqrt_dim=1.0 / math.sqrt(DIM))

    out = pl.pallas_call(
        kernel,
        out_shape=jax.ShapeDtypeStruct((B, N, DIM), x.dtype),
        grid=(B, pl.cdiv(N, tq), pl.cdiv(N, tk)),
        in_specs=[
            pl.BlockSpec((1, tq, DIM), lambda b, qi, ki: (b, qi, 0)),
            pl.BlockSpec((1, tk, DIM), lambda b, qi, ki: (b, ki, 0)),
            pl.BlockSpec((1, tk, DIM), lambda b, qi, ki: (b, ki, 0)),
        ],
        out_specs=pl.BlockSpec((1, tq, DIM), lambda b, qi, ki: (b, qi, 0)),
        scratch_shapes=[
            pltpu.VMEM((H, tq, dh), compute_dtype),    # Q, head-leading
            pltpu.VMEM((H, tk, dh), compute_dtype),    # K, head-leading
            pltpu.VMEM((H, tk, dh), compute_dtype),    # V, head-leading
            pltpu.VMEM((H, tq, dh), jnp.float32),      # accumulator over keys
        ],
        compiler_params=pltpu.CompilerParams(
            dimension_semantics=("parallel", "parallel", "arbitrary"),
            vmem_limit_bytes=32 * 1024 * 1024),
    )(q3, k3, v3)
    return out  # already (B, N, DIM) in x.dtype; to_out is Identity.


def _reference(x, wq, wk, wv, *, num_heads):
    """Plain-JAX f32 reference mirroring the PyTorch forward exactly."""
    B, N, DIM = x.shape
    dh = DIM // num_heads
    q = jnp.einsum('bnc,oc->bno', x, wq).reshape(B, N, num_heads, dh).transpose(0, 2, 1, 3)
    k = jnp.einsum('bnc,oc->bno', x, wk).reshape(B, N, num_heads, dh).transpose(0, 2, 1, 3)
    v = jnp.einsum('bnc,oc->bno', x, wv).reshape(B, N, num_heads, dh).transpose(0, 2, 1, 3)
    s = jnp.einsum('bhqd,bhkd->bhqk', q, k)
    p = jax.nn.softmax(s, axis=1) / math.sqrt(DIM)   # softmax over heads (module quirk)
    o = jnp.einsum('bhqk,bhkd->bhqd', p, v)
    return o.transpose(0, 2, 1, 3).reshape(B, N, DIM)


def _run_case(key, B, N, DIM, H, w_scale):
    kx, kq, kk, kv = jax.random.split(key, 4)
    x = jax.random.normal(kx, (B, N, DIM), dtype=jnp.float32)
    # Deterministic synthetic Linear weights, shape (out_features, in_features).
    wq = w_scale * jax.random.normal(kq, (DIM, DIM), dtype=jnp.float32)
    wk = w_scale * jax.random.normal(kk, (DIM, DIM), dtype=jnp.float32)
    wv = w_scale * jax.random.normal(kv, (DIM, DIM), dtype=jnp.float32)

    out = multi_head_attention(x, wq, wk, wv, num_heads=H)
    out = jax.block_until_ready(out)
    ref = _reference(x, wq, wk, wv, num_heads=H)

    assert out.shape == (B, N, DIM)
    # Tolerance accounts for bf16 MXU inputs + approx reciprocal (f32 accum).
    assert jnp.allclose(out, ref, atol=2e-2, rtol=2e-2), "mismatch vs reference"


if __name__ == "__main__":
    key = jax.random.PRNGKey(0)
    k1, k2 = jax.random.split(key)

    # Small shapes consistent with the module (dim divisible by num_heads).
    _run_case(k1, B=2, N=8, DIM=32, H=4, w_scale=0.05)

    # A second case that exercises multi-block q tiling, key tiling with a
    # masked partial key block, and edge-row masking (N not a tile multiple).
    _run_case(k2, B=1, N=600, DIM=256, H=4, w_scale=0.03)

    print("KERNEL_OK")
</pallas_src>

<mosaic_0001>
module attributes {stable_mosaic.version = 11 : i64} {
  func.func @_qkv_proj_kernel(%arg0: i32, %arg1: memref<16x32xf32, #tpu.memory_space<vmem>>, %arg2: memref<32x96xbf16, #tpu.memory_space<vmem>>, %arg3: memref<16x32xbf16, #tpu.memory_space<vmem>>, %arg4: memref<16x32xbf16, #tpu.memory_space<vmem>>, %arg5: memref<16x32xbf16, #tpu.memory_space<vmem>>) attributes {dimension_semantics = [#tpu.dimension_semantics<parallel>], iteration_bounds = array<i64: 1>, scalar_prefetch = 0 : i64, scratch_operands = 0 : i64, tpu.core_type = #tpu.core_type<tc>, window_params = [{transform_indices = @transform_0, window_bounds = array<i64: 16, 32>}, {pipeline_mode = #tpu.pipeline_mode<synchronous>, transform_indices = @transform_1, window_bounds = array<i64: 32, 96>}, {transform_indices = @transform_2, window_bounds = array<i64: 16, 32>}, {transform_indices = @transform_3, window_bounds = array<i64: 16, 32>}, {transform_indices = @transform_4, window_bounds = array<i64: 16, 32>}]} {
    %c0 = arith.constant 0 : index
    %c0_0 = arith.constant 0 : index
    %0 = vector.load %arg1[%c0, %c0_0] : memref<16x32xf32, #tpu.memory_space<vmem>>, vector<16x32xf32>
    %1 = arith.truncf %0 : vector<16x32xf32> to vector<16x32xbf16>
    %c0_1 = arith.constant 0 : index
    %c0_2 = arith.constant 0 : index
    %2 = vector.load %arg2[%c0_1, %c0_2] : memref<32x96xbf16, #tpu.memory_space<vmem>>, vector<32x96xbf16>
    %cst = arith.constant dense<0.000000e+00> : vector<16x96xf32>
    %3 = tpu.matmul %1, %2, %cst {dimension_numbers = #tpu.dot_dimension_numbers<[1], [0], [0], [1], [0, 0, 1, 1], [], []>} : vector<16x32xbf16>, vector<32x96xbf16>, vector<16x96xf32> -> vector<16x96xf32>
    %4 = vector.extract_strided_slice %3 {offsets = [0, 0], sizes = [16, 32], strides = [1, 1]} : vector<16x96xf32> to vector<16x32xf32>
    %5 = arith.truncf %4 : vector<16x32xf32> to vector<16x32xbf16>
    %c0_3 = arith.constant 0 : index
    %c0_4 = arith.constant 0 : index
    %6 = vector.load %arg3[%c0_3, %c0_4] : memref<16x32xbf16, #tpu.memory_space<vmem>>, vector<16x32xbf16>
    tpu.vector_store %arg3[%c0_3, %c0_4], %5 {strides = array<i32>} : memref<16x32xbf16, #tpu.memory_space<vmem>>, vector<16x32xbf16>,
    %7 = vector.extract_strided_slice %3 {offsets = [0, 32], sizes = [16, 32], strides = [1, 1]} : vector<16x96xf32> to vector<16x32xf32>
    %8 = arith.truncf %7 : vector<16x32xf32> to vector<16x32xbf16>
    %c0_5 = arith.constant 0 : index
    %c0_6 = arith.constant 0 : index
    %9 = vector.load %arg4[%c0_5, %c0_6] : memref<16x32xbf16, #tpu.memory_space<vmem>>, vector<16x32xbf16>
    tpu.vector_store %arg4[%c0_5, %c0_6], %8 {strides = array<i32>} : memref<16x32xbf16, #tpu.memory_space<vmem>>, vector<16x32xbf16>,
    %10 = vector.extract_strided_slice %3 {offsets = [0, 64], sizes = [16, 32], strides = [1, 1]} : vector<16x96xf32> to vector<16x32xf32>
    %11 = arith.truncf %10 : vector<16x32xf32> to vector<16x32xbf16>
    %c0_7 = arith.constant 0 : index
    %c0_8 = arith.constant 0 : index
    %12 = vector.load %arg5[%c0_7, %c0_8] : memref<16x32xbf16, #tpu.memory_space<vmem>>, vector<16x32xbf16>
    tpu.vector_store %arg5[%c0_7, %c0_8], %11 {strides = array<i32>} : memref<16x32xbf16, #tpu.memory_space<vmem>>, vector<16x32xbf16>,
    return
  }
  func.func @transform_0(%arg0: i32) -> (i32, i32) {
    %c0_i32 = arith.constant 0 : i32
    %c0_i32_0 = arith.constant 0 : i32
    return %arg0, %c0_i32 : i32, i32
  }
  func.func @transform_1(%arg0: i32) -> (i32, i32) {
    %c0_i32 = arith.constant 0 : i32
    %c0_i32_0 = arith.constant 0 : i32
    %c0_i32_1 = arith.constant 0 : i32
    return %c0_i32, %c0_i32_0 : i32, i32
  }
  func.func @transform_2(%arg0: i32) -> (i32, i32) {
    %c0_i32 = arith.constant 0 : i32
    %c0_i32_0 = arith.constant 0 : i32
    return %arg0, %c0_i32 : i32, i32
  }
  func.func @transform_3(%arg0: i32) -> (i32, i32) {
    %c0_i32 = arith.constant 0 : i32
    %c0_i32_0 = arith.constant 0 : i32
    return %arg0, %c0_i32 : i32, i32
  }
  func.func @transform_4(%arg0: i32) -> (i32, i32) {
    %c0_i32 = arith.constant 0 : i32
    %c0_i32_0 = arith.constant 0 : i32
    return %arg0, %c0_i32 : i32, i32
  }
}

module attributes {stable_mosaic.version = 11 : i64} {
  func.func @_attention_kernel(%arg0: i32, %arg1: i32, %arg2: i32, %arg3: memref<1x8x32xbf16, #tpu.memory_space<vmem>>, %arg4: memref<1x8x32xbf16, #tpu.memory_space<vmem>>, %arg5: memref<1x8x32xbf16, #tpu.memory_space<vmem>>, %arg6: memref<1x8x32xf32, #tpu.memory_space<vmem>>, %arg7: memref<4x8x8xbf16, #tpu.memory_space<vmem>>, %arg8: memref<4x8x8xbf16, #tpu.memory_space<vmem>>, %arg9: memref<4x8x8xbf16, #tpu.memory_space<vmem>>, %arg10: memref<4x8x8xf32, #tpu.memory_space<vmem>>) attributes {dimension_semantics = [#tpu.dimension_semantics<parallel>, #tpu.dimension_semantics<parallel>, #tpu.dimension_semantics<arbitrary>], iteration_bounds = array<i64: 2, 1, 1>, scalar_prefetch = 0 : i64, scratch_operands = 4 : i64, tpu.core_type = #tpu.core_type<tc>, window_params = [{transform_indices = @transform_0, window_bounds = array<i64: 1, 8, 32>}, {transform_indices = @transform_1, window_bounds = array<i64: 1, 8, 32>}, {transform_indices = @transform_2, window_bounds = array<i64: 1, 8, 32>}, {transform_indices = @transform_3, window_bounds = array<i64: 1, 8, 32>}]} {
    %c0_i32 = arith.constant 0 : i32
    %0 = arith.cmpi eq, %arg2, %c0_i32 : i32
    %1 = arith.extui %0 : i1 to i32
    %c0_i32_0 = arith.constant 0 : i32
    %2 = arith.cmpi ne, %1, %c0_i32_0 : i32
    scf.if %2 {
      %cst_48 = arith.constant 0.000000e+00 : f32
      %63 = vector.broadcast %cst_48 : f32 to vector<4x8x8xf32>
      %c0_49 = arith.constant 0 : index
      %c0_50 = arith.constant 0 : index
      %c0_51 = arith.constant 0 : index
      %64 = vector.load %arg10[%c0_49, %c0_50, %c0_51] : memref<4x8x8xf32, #tpu.memory_space<vmem>>, vector<4x8x8xf32>
      tpu.vector_store %arg10[%c0_49, %c0_50, %c0_51], %63 {strides = array<i32>} : memref<4x8x8xf32, #tpu.memory_space<vmem>>, vector<4x8x8xf32>,
      %c0_52 = arith.constant 0 : index
      %c0_53 = arith.constant 0 : index
      %c0_54 = arith.constant 0 : index
      %65 = vector.load %arg3[%c0_52, %c0_53, %c0_54] : memref<1x8x32xbf16, #tpu.memory_space<vmem>>, vector<1x8x32xbf16>
      %66 = vector.shape_cast %65 : vector<1x8x32xbf16> to vector<8x32xbf16>
      %67 = vector.extract_strided_slice %66 {offsets = [0, 0], sizes = [8, 8], strides = [1, 1]} : vector<8x32xbf16> to vector<8x8xbf16>
      %c0_55 = arith.constant 0 : index
      %c0_56 = arith.constant 0 : index
      %c0_57 = arith.constant 0 : index
      %68 = vector.load %arg7[%c0_55, %c0_56, %c0_57] : memref<4x8x8xbf16, #tpu.memory_space<vmem>>, vector<1x8x8xbf16>
      %69 = vector.shape_cast %68 : vector<1x8x8xbf16> to vector<8x8xbf16>
      %70 = vector.shape_cast %67 : vector<8x8xbf16> to vector<1x8x8xbf16>
      tpu.vector_store %arg7[%c0_55, %c0_56, %c0_57], %70 {strides = array<i32>} : memref<4x8x8xbf16, #tpu.memory_space<vmem>>, vector<1x8x8xbf16>,
      %71 = vector.extract_strided_slice %66 {offsets = [0, 8], sizes = [8, 8], strides = [1, 1]} : vector<8x32xbf16> to vector<8x8xbf16>
      %c1_58 = arith.constant 1 : index
      %c0_59 = arith.constant 0 : index
      %c0_60 = arith.constant 0 : index
      %72 = vector.load %arg7[%c1_58, %c0_59, %c0_60] : memref<4x8x8xbf16, #tpu.memory_space<vmem>>, vector<1x8x8xbf16>
      %73 = vector.shape_cast %72 : vector<1x8x8xbf16> to vector<8x8xbf16>
      %74 = vector.shape_cast %71 : vector<8x8xbf16> to vector<1x8x8xbf16>
      tpu.vector_store %arg7[%c1_58, %c0_59, %c0_60], %74 {strides = array<i32>} : memref<4x8x8xbf16, #tpu.memory_space<vmem>>, vector<1x8x8xbf16>,
      %75 = vector.extract_strided_slice %66 {offsets = [0, 16], sizes = [8, 8], strides = [1, 1]} : vector<8x32xbf16> to vector<8x8xbf16>
      %c2_61 = arith.constant 2 : index
      %c0_62 = arith.constant 0 : index
      %c0_63 = arith.constant 0 : index
      %76 = vector.load %arg7[%c2_61, %c0_62, %c0_63] : memref<4x8x8xbf16, #tpu.memory_space<vmem>>, vector<1x8x8xbf16>
      %77 = vector.shape_cast %76 : vector<1x8x8xbf16> to vector<8x8xbf16>
      %78 = vector.shape_cast %75 : vector<8x8xbf16> to vector<1x8x8xbf16>
      tpu.vector_store %arg7[%c2_61, %c0_62, %c0_63], %78 {strides = array<i32>} : memref<4x8x8xbf16, #tpu.memory_space<vmem>>, vector<1x8x8xbf16>,
      %79 = vector.extract_strided_slice %66 {offsets = [0, 24], sizes = [8, 8], strides = [1, 1]} : vector<8x32xbf16> to vector<8x8xbf16>
      %c3_64 = arith.constant 3 : index
      %c0_65 = arith.constant 0 : index
      %c0_66 = arith.constant 0 : index
      %80 = vector.load %arg7[%c3_64, %c0_65, %c0_66] : memref<4x8x8xbf16, #tpu.memory_space<vmem>>, vector<1x8x8xbf16>
      %81 = vector.shape_cast %80 : vector<1x8x8xbf16> to vector<8x8xbf16>
      %82 = vector.shape_cast %79 : vector<8x8xbf16> to vector<1x8x8xbf16>
      tpu.vector_store %arg7[%c3_64, %c0_65, %c0_66], %82 {strides = array<i32>} : memref<4x8x8xbf16, #tpu.memory_space<vmem>>, vector<1x8x8xbf16>,
    } else {
    }
    %c0 = arith.constant 0 : index
    %c0_1 = arith.constant 0 : index
    %c0_2 = arith.constant 0 : index
    %3 = vector.load %arg4[%c0, %c0_1, %c0_2] : memref<1x8x32xbf16, #tpu.memory_space<vmem>>, vector<1x8x32xbf16>
    %4 = vector.shape_cast %3 : vector<1x8x32xbf16> to vector<8x32xbf16>
    %c0_3 = arith.constant 0 : index
    %c0_4 = arith.constant 0 : index
    %c0_5 = arith.constant 0 : index
    %5 = vector.load %arg5[%c0_3, %c0_4, %c0_5] : memref<1x8x32xbf16, #tpu.memory_space<vmem>>, vector<1x8x32xbf16>
    %6 = vector.shape_cast %5 : vector<1x8x32xbf16> to vector<8x32xbf16>
    %7 = vector.extract_strided_slice %4 {offsets = [0, 0], sizes = [8, 8], strides = [1, 1]} : vector<8x32xbf16> to vector<8x8xbf16>
    %c0_6 = arith.constant 0 : index
    %c0_7 = arith.constant 0 : index
    %c0_8 = arith.constant 0 : index
    %8 = vector.load %arg8[%c0_6, %c0_7, %c0_8] : memref<4x8x8xbf16, #tpu.memory_space<vmem>>, vector<1x8x8xbf16>
    %9 = vector.shape_cast %8 : vector<1x8x8xbf16> to vector<8x8xbf16>
    %10 = vector.shape_cast %7 : vector<8x8xbf16> to vector<1x8x8xbf16>
    tpu.vector_store %arg8[%c0_6, %c0_7, %c0_8], %10 {strides = array<i32>} : memref<4x8x8xbf16, #tpu.memory_space<vmem>>, vector<1x8x8xbf16>,
    %11 = vector.extract_strided_slice %6 {offsets = [0, 0], sizes = [8, 8], strides = [1, 1]} : vector<8x32xbf16> to vector<8x8xbf16>
    %c0_9 = arith.constant 0 : index
    %c0_10 = arith.constant 0 : index
    %c0_11 = arith.constant 0 : index
    %12 = vector.load %arg9[%c0_9, %c0_10, %c0_11] : memref<4x8x8xbf16, #tpu.memory_space<vmem>>, vector<1x8x8xbf16>
    %13 = vector.shape_cast %12 : vector<1x8x8xbf16> to vector<8x8xbf16>
    %14 = vector.shape_cast %11 : vector<8x8xbf16> to vector<1x8x8xbf16>
    tpu.vector_store %arg9[%c0_9, %c0_10, %c0_11], %14 {strides = array<i32>} : memref<4x8x8xbf16, #tpu.memory_space<vmem>>, vector<1x8x8xbf16>,
    %15 = vector.extract_strided_slice %4 {offsets = [0, 8], sizes = [8, 8], strides = [1, 1]} : vector<8x32xbf16> to vector<8x8xbf16>
    %c1 = arith.constant 1 : index
    %c0_12 = arith.constant 0 : index
    %c0_13 = arith.constant 0 : index
    %16 = vector.load %arg8[%c1, %c0_12, %c0_13] : memref<4x8x8xbf16, #tpu.memory_space<vmem>>, vector<1x8x8xbf16>
    %17 = vector.shape_cast %16 : vector<1x8x8xbf16> to vector<8x8xbf16>
    %18 = vector.shape_cast %15 : vector<8x8xbf16> to vector<1x8x8xbf16>
    tpu.vector_store %arg8[%c1, %c0_12, %c0_13], %18 {strides = array<i32>} : memref<4x8x8xbf16, #tpu.memory_space<vmem>>, vector<1x8x8xbf16>,
    %19 = vector.extract_strided_slice %6 {offsets = [0, 8], sizes = [8, 8], strides = [1, 1]} : vector<8x32xbf16> to vector<8x8xbf16>
    %c1_14 = arith.constant 1 : index
    %c0_15 = arith.constant 0 : index
    %c0_16 = arith.constant 0 : index
    %20 = vector.load %arg9[%c1_14, %c0_15, %c0_16] : memref<4x8x8xbf16, #tpu.memory_space<vmem>>, vector<1x8x8xbf16>
    %21 = vector.shape_cast %20 : vector<1x8x8xbf16> to vector<8x8xbf16>
    %22 = vector.shape_cast %19 : vector<8x8xbf16> to vector<1x8x8xbf16>
    tpu.vector_store %arg9[%c1_14, %c0_15, %c0_16], %22 {strides = array<i32>} : memref<4x8x8xbf16, #tpu.memory_space<vmem>>, vector<1x8x8xbf16>,
    %23 = vector.extract_strided_slice %4 {offsets = [0, 16], sizes = [8, 8], strides = [1, 1]} : vector<8x32xbf16> to vector<8x8xbf16>
    %c2 = arith.constant 2 : index
    %c0_17 = arith.constant 0 : index
    %c0_18 = arith.constant 0 : index
    %24 = vector.load %arg8[%c2, %c0_17, %c0_18] : memref<4x8x8xbf16, #tpu.memory_space<vmem>>, vector<1x8x8xbf16>
    %25 = vector.shape_cast %24 : vector<1x8x8xbf16> to vector<8x8xbf16>
    %26 = vector.shape_cast %23 : vector<8x8xbf16> to vector<1x8x8xbf16>
    tpu.vector_store %arg8[%c2, %c0_17, %c0_18], %26 {strides = array<i32>} : memref<4x8x8xbf16, #tpu.memory_space<vmem>>, vector<1x8x8xbf16>,
    %27 = vector.extract_strided_slice %6 {offsets = [0, 16], sizes = [8, 8], strides = [1, 1]} : vector<8x32xbf16> to vector<8x8xbf16>
    %c2_19 = arith.constant 2 : index
    %c0_20 = arith.constant 0 : index
    %c0_21 = arith.constant 0 : index
    %28 = vector.load %arg9[%c2_19, %c0_20, %c0_21] : memref<4x8x8xbf16, #tpu.memory_space<vmem>>, vector<1x8x8xbf16>
    %29 = vector.shape_cast %28 : vector<1x8x8xbf16> to vector<8x8xbf16>
    %30 = vector.shape_cast %27 : vector<8x8xbf16> to vector<1x8x8xbf16>
    tpu.vector_store %arg9[%c2_19, %c0_20, %c0_21], %30 {strides = array<i32>} : memref<4x8x8xbf16, #tpu.memory_space<vmem>>, vector<1x8x8xbf16>,
    %31 = vector.extract_strided_slice %4 {offsets = [0, 24], sizes = [8, 8], strides = [1, 1]} : vector<8x32xbf16> to vector<8x8xbf16>
    %c3 = arith.constant 3 : index
    %c0_22 = arith.constant 0 : index
    %c0_23 = arith.constant 0 : index
    %32 = vector.load %arg8[%c3, %c0_22, %c0_23] : memref<4x8x8xbf16, #tpu.memory_space<vmem>>, vector<1x8x8xbf16>
    %33 = vector.shape_cast %32 : vector<1x8x8xbf16> to vector<8x8xbf16>
    %34 = vector.shape_cast %31 : vector<8x8xbf16> to vector<1x8x8xbf16>
    tpu.vector_store %arg8[%c3, %c0_22, %c0_23], %34 {strides = array<i32>} : memref<4x8x8xbf16, #tpu.memory_space<vmem>>, vector<1x8x8xbf16>,
    %35 = vector.extract_strided_slice %6 {offsets = [0, 24], sizes = [8, 8], strides = [1, 1]} : vector<8x32xbf16> to vector<8x8xbf16>
    %c3_24 = arith.constant 3 : index
    %c0_25 = arith.constant 0 : index
    %c0_26 = arith.constant 0 : index
    %36 = vector.load %arg9[%c3_24, %c0_25, %c0_26] : memref<4x8x8xbf16, #tpu.memory_space<vmem>>, vector<1x8x8xbf16>
    %37 = vector.shape_cast %36 : vector<1x8x8xbf16> to vector<8x8xbf16>
    %38 = vector.shape_cast %35 : vector<8x8xbf16> to vector<1x8x8xbf16>
    tpu.vector_store %arg9[%c3_24, %c0_25, %c0_26], %38 {strides = array<i32>} : memref<4x8x8xbf16, #tpu.memory_space<vmem>>, vector<1x8x8xbf16>,
    %c0_27 = arith.constant 0 : index
    %c0_28 = arith.constant 0 : index
    %c0_29 = arith.constant 0 : index
    %39 = vector.load %arg7[%c0_27, %c0_28, %c0_29] : memref<4x8x8xbf16, #tpu.memory_space<vmem>>, vector<4x8x8xbf16>
    %c0_30 = arith.constant 0 : index
    %c0_31 = arith.constant 0 : index
    %c0_32 = arith.constant 0 : index
    %40 = vector.load %arg8[%c0_30, %c0_31, %c0_32] : memref<4x8x8xbf16, #tpu.memory_space<vmem>>, vector<4x8x8xbf16>
    "tpu.trace_start"() <{level = 10 : i32, message = "hqd,hkd->hqk"}> : () -> ()
    %cst = arith.constant dense<0.000000e+00> : vector<4x8x8xf32>
    %41 = tpu.matmul %39, %40, %cst {dimension_numbers = #tpu.dot_dimension_numbers<[2], [2], [1], [1], [0, 0, 0, 1, 1, 1], [0], [0]>} : vector<4x8x8xbf16>, vector<4x8x8xbf16>, vector<4x8x8xf32> -> vector<4x8x8xf32>
    "tpu.trace_stop"() : () -> ()
    %cst_33 = arith.constant dense<0xFF800000> : vector<8x8xf32>
    %42 = vector.multi_reduction <maximumf>, %41, %cst_33 [0] : vector<4x8x8xf32> to vector<8x8xf32>
    %43 = vector.shape_cast %42 : vector<8x8xf32> to vector<1x8x8xf32>
    %44 = vector.broadcast %43 : vector<1x8x8xf32> to vector<4x8x8xf32>
    %45 = arith.subf %41, %44 : vector<4x8x8xf32>
    %46 = math.exp %45 : vector<4x8x8xf32>
    %cst_34 = arith.constant dense<0.000000e+00> : vector<8x8xf32>
    %47 = vector.multi_reduction <add>, %46, %cst_34 [0] : vector<4x8x8xf32> to vector<8x8xf32>
    %48 = vector.shape_cast %47 : vector<8x8xf32> to vector<1x8x8xf32>
    %49 = tpu.reciprocal %48 {approx = true} : vector<1x8x8xf32> -> vector<1x8x8xf32>
    %cst_35 = arith.constant 0.176776692 : f32
    %50 = vector.broadcast %cst_35 : f32 to vector<1x8x8xf32>
    %51 = arith.mulf %49, %50 : vector<1x8x8xf32>
    %52 = vector.broadcast %51 : vector<1x8x8xf32> to vector<4x8x8xf32>
    %53 = arith.mulf %46, %52 : vector<4x8x8xf32>
    %c0_36 = arith.constant 0 : index
    %c0_37 = arith.constant 0 : index
    %c0_38 = arith.constant 0 : index
    %54 = vector.load %arg10[%c0_36, %c0_37, %c0_38] : memref<4x8x8xf32, #tpu.memory_space<vmem>>, vector<4x8x8xf32>
    %55 = arith.truncf %53 : vector<4x8x8xf32> to vector<4x8x8xbf16>
    %c0_39 = arith.constant 0 : index
    %c0_40 = arith.constant 0 : index
    %c0_41 = arith.constant 0 : index
    %56 = vector.load %arg9[%c0_39, %c0_40, %c0_41] : memref<4x8x8xbf16, #tpu.memory_space<vmem>>, vector<4x8x8xbf16>
    "tpu.trace_start"() <{level = 10 : i32, message = "hqk,hkd->hqd"}> : () -> ()
    %cst_42 = arith.constant dense<0.000000e+00> : vector<4x8x8xf32>
    %57 = tpu.matmul %55, %56, %cst_42 {dimension_numbers = #tpu.dot_dimension_numbers<[2], [1], [1], [2], [0, 0, 0, 1, 1, 2], [0], [0]>} : vector<4x8x8xbf16>, vector<4x8x8xbf16>, vector<4x8x8xf32> -> vector<4x8x8xf32>
    "tpu.trace_stop"() : () -> ()
    %58 = arith.addf %54, %57 : vector<4x8x8xf32>
    %c0_43 = arith.constant 0 : index
    %c0_44 = arith.constant 0 : index
    %c0_45 = arith.constant 0 : index
    %59 = vector.load %arg10[%c0_43, %c0_44, %c0_45] : memref<4x8x8xf32, #tpu.memory_space<vmem>>, vector<4x8x8xf32>
    tpu.vector_store %arg10[%c0_43, %c0_44, %c0_45], %58 {strides = array<i32>} : memref<4x8x8xf32, #tpu.memory_space<vmem>>, vector<4x8x8xf32>,
    %c0_i32_46 = arith.constant 0 : i32
    %60 = arith.cmpi eq, %arg2, %c0_i32_46 : i32
    %61 = arith.extui %60 : i1 to i32
    %c0_i32_47 = arith.constant 0 : i32
    %62 = arith.cmpi ne, %61, %c0_i32_47 : i32
    scf.if %62 {
      %c0_48 = arith.constant 0 : index
      %c0_49 = arith.constant 0 : index
      %c0_50 = arith.constant 0 : index
      %63 = vector.load %arg10[%c0_48, %c0_49, %c0_50] : memref<4x8x8xf32, #tpu.memory_space<vmem>>, vector<1x8x8xf32>
      %64 = vector.shape_cast %63 : vector<1x8x8xf32> to vector<8x8xf32>
      %c0_51 = arith.constant 0 : index
      %c0_52 = arith.constant 0 : index
      %c0_53 = arith.constant 0 : index
      %65 = vector.load %arg6[%c0_51, %c0_52, %c0_53] : memref<1x8x32xf32, #tpu.memory_space<vmem>>, vector<1x8x8xf32>
      %66 = vector.shape_cast %65 : vector<1x8x8xf32> to vector<8x8xf32>
      %67 = vector.shape_cast %64 : vector<8x8xf32> to vector<1x8x8xf32>
      tpu.vector_store %arg6[%c0_51, %c0_52, %c0_53], %67 {strides = array<i32>} : memref<1x8x32xf32, #tpu.memory_space<vmem>>, vector<1x8x8xf32>,
      %c1_54 = arith.constant 1 : index
      %c0_55 = arith.constant 0 : index
      %c0_56 = arith.constant 0 : index
      %68 = vector.load %arg10[%c1_54, %c0_55, %c0_56] : memref<4x8x8xf32, #tpu.memory_space<vmem>>, vector<1x8x8xf32>
      %69 = vector.shape_cast %68 : vector<1x8x8xf32> to vector<8x8xf32>
      %c0_57 = arith.constant 0 : index
      %c0_58 = arith.constant 0 : index
      %c8 = arith.constant 8 : index
      %70 = vector.load %arg6[%c0_57, %c0_58, %c8] : memref<1x8x32xf32, #tpu.memory_space<vmem>>, vector<1x8x8xf32>
      %71 = vector.shape_cast %70 : vector<1x8x8xf32> to vector<8x8xf32>
      %72 = vector.shape_cast %69 : vector<8x8xf32> to vector<1x8x8xf32>
      tpu.vector_store %arg6[%c0_57, %c0_58, %c8], %72 {strides = array<i32>} : memref<1x8x32xf32, #tpu.memory_space<vmem>>, vector<1x8x8xf32>,
      %c2_59 = arith.constant 2 : index
      %c0_60 = arith.constant 0 : index
      %c0_61 = arith.constant 0 : index
      %73 = vector.load %arg10[%c2_59, %c0_60, %c0_61] : memref<4x8x8xf32, #tpu.memory_space<vmem>>, vector<1x8x8xf32>
      %74 = vector.shape_cast %73 : vector<1x8x8xf32> to vector<8x8xf32>
      %c0_62 = arith.constant 0 : index
      %c0_63 = arith.constant 0 : index
      %c16 = arith.constant 16 : index
      %75 = vector.load %arg6[%c0_62, %c0_63, %c16] : memref<1x8x32xf32, #tpu.memory_space<vmem>>, vector<1x8x8xf32>
      %76 = vector.shape_cast %75 : vector<1x8x8xf32> to vector<8x8xf32>
      %77 = vector.shape_cast %74 : vector<8x8xf32> to vector<1x8x8xf32>
      tpu.vector_store %arg6[%c0_62, %c0_63, %c16], %77 {strides = array<i32>} : memref<1x8x32xf32, #tpu.memory_space<vmem>>, vector<1x8x8xf32>,
      %c3_64 = arith.constant 3 : index
      %c0_65 = arith.constant 0 : index
      %c0_66 = arith.constant 0 : index
      %78 = vector.load %arg10[%c3_64, %c0_65, %c0_66] : memref<4x8x8xf32, #tpu.memory_space<vmem>>, vector<1x8x8xf32>
      %79 = vector.shape_cast %78 : vector<1x8x8xf32> to vector<8x8xf32>
      %c0_67 = arith.constant 0 : index
      %c0_68 = arith.constant 0 : index
      %c24 = arith.constant 24 : index
      %80 = vector.load %arg6[%c0_67, %c0_68, %c24] : memref<1x8x32xf32, #tpu.memory_space<vmem>>, vector<1x8x8xf32>
      %81 = vector.shape_cast %80 : vector<1x8x8xf32> to vector<8x8xf32>
      %82 = vector.shape_cast %79 : vector<8x8xf32> to vector<1x8x8xf32>
      tpu.vector_store %arg6[%c0_67, %c0_68, %c24], %82 {strides = array<i32>} : memref<1x8x32xf32, #tpu.memory_space<vmem>>, vector<1x8x8xf32>,
    } else {
    }
    return
  }
  func.func @transform_0(%arg0: i32, %arg1: i32, %arg2: i32) -> (i32, i32, i32) {
    %c0_i32 = arith.constant 0 : i32
    %c0_i32_0 = arith.constant 0 : i32
    return %arg0, %arg1, %c0_i32 : i32, i32, i32
  }
  func.func @transform_1(%arg0: i32, %arg1: i32, %arg2: i32) -> (i32, i32, i32) {
    %c0_i32 = arith.constant 0 : i32
    %c0_i32_0 = arith.constant 0 : i32
    return %arg0, %arg2, %c0_i32 : i32, i32, i32
  }
  func.func @transform_2(%arg0: i32, %arg1: i32, %arg2: i32) -> (i32, i32, i32) {
    %c0_i32 = arith.constant 0 : i32
    %c0_i32_0 = arith.constant 0 : i32
    return %arg0, %arg2, %c0_i32 : i32, i32, i32
  }
  func.func @transform_3(%arg0: i32, %arg1: i32, %arg2: i32) -> (i32, i32, i32) {
    %c0_i32 = arith.constant 0 : i32
    %c0_i32_0 = arith.constant 0 : i32
    return %arg0, %arg1, %c0_i32 : i32, i32, i32
  }
}

</mosaic_0001>

<llo_original>
// kernel: multi_head_attention.2
$region0: #{multi_head_attention.2}
  #allocation0 [shape = 'u32[]', space=smem, size = 0x4, offset = 0x4, fixed_abs, tag = 'smem constant byte address 0x4 - core index']
  #allocation1 [shape = 'u32[72,128]{1,0:T(1,128)}', space=vmem, size = 0x9000, scoped, tag = 'internal scratch']
  %s0 = inlined_call_operand.vmem [shape: f32[16,32], index: 0, kind: input, shape index: {}]
  %s1 = inlined_call_operand.vmem [shape: bf16[32,96], index: 1, kind: input, shape index: {}]
  %s2 = inlined_call_operand.vmem [shape: bf16[16,32], index: 2, kind: output, shape index: {0}]
  %s3 = inlined_call_operand.vmem [shape: bf16[16,32], index: 3, kind: output, shape index: {1}]
  %s4 = inlined_call_operand.vmem [shape: bf16[16,32], index: 4, kind: output, shape index: {2}]
  %5 = xla_tuple %s2, %s3, %s4
  %s6 = sld [smem:[#allocation0]]
  $region34: #{multi_head_attention.2} parent=0
    _
  %s8 = ssub.s32 1, %s6
  %s9 = scalar_select 0, %s8, %s6
  // Predicated region
  $region2: #{multi_head_attention.2} parent=0 // pred_check
    _
  $region3: #{multi_head_attention.2} parent=0 // pred_check_branch
    %11 = sbr.rel (0) target = $region5
  $region4: #{multi_head_attention.2} parent=0 // pred_region
    _
  $region5: #{multi_head_attention.2} parent=0 // pred_fallthru
    _
  // Predicated region
  $region6: #{multi_head_attention.2} parent=0 // pred_check
    _
  $region7: #{multi_head_attention.2} parent=0 // pred_check_branch
    %13 = sbr.rel (0) target = $region9
  $region8: #{multi_head_attention.2} parent=0 // pred_region
    _
  $region9: #{multi_head_attention.2} parent=0 // pred_fallthru
    _
  %v15 = vld [vmem:[%s0] sm:$0xff]
  %v16 = vld [vmem:[%s0 + $0x8] sm:$0xff]
  %v17 = vpack.c.bf16 %v16, %v15
  %v18 = vld [vmem:[%s1] sm:$0xf]
  %v19 = vld [vmem:[%s1 + $0x4] sm:$0xf]
  %v20 = vld [vmem:[%s1 + $0x8] sm:$0xf]
  %v21 = vld [vmem:[%s1 + $0xc] sm:$0xf]
  %v26 = vunpack.c.l.b16 %v18
  %v27 = vunpack.c.l.b16 %v19
  %v28 = vunpack.c.l.b16 %v20
  %v29 = vunpack.c.l.b16 %v21
  %v30 = vpack.c.b16 %v27, %v26
  %v31 = vpack.c.b16 %v29, %v28
  %vm34 = vcmask 261120
  %v36 = vsel %vm34, %v17, 0
  %38 = vmatpush.bf16.msra.mxu0 0
  %39 = vmatpush.bf16.msra.mxu0 0
  %40 = vmatpush.bf16.msra.mxu0 0
  %41 = vmatpush.bf16.msra.mxu0 0
  %42 = vmatpush.bf16.msra.mxu0 0
  %43 = vmatpush.bf16.msra.mxu0 0
  %44 = vmatpush.bf16.msra.mxu0 %v31
  %45 = vmatpush.bf16.msra.mxu0 %v30
  %46 = vmatmul.bf16.gmra.mxu0 %v36
  %v47 = vpop.f32.mrf.mxu0
  %v48 = vadd.f32 0.0, %v47
  %v49 = vpop.f32.mrf.mxu0
  %v50 = vadd.f32 0.0, %v49
  %51 = vdwg.mxu0
  %v52 = vpack.c.bf16 %v48, %v48
  %v53 = vpack.c.bf16 %v50, %v50
  %vm54 = vcmask 257024
  %55 = vst.msk [vmem:[%s2] sm:$0xf] %vm54, %v52
  %56 = vst.msk [vmem:[%s2 + $0x4] sm:$0xf] %vm54, %v53
  %59 = vrot.lane.b32.xlu0 %v52, 96
  %v60 = vpop.permute.xlu0 %59
  %61 = vrot.lane.b32.xlu0 %v53, 96
  %v62 = vpop.permute.xlu0 %61
  %65 = vst.msk [vmem:[%s3] sm:$0xf] %vm54, %v60
  %66 = vst.msk [vmem:[%s3 + $0x4] sm:$0xf] %vm54, %v62
  %67 = vrot.lane.b32.xlu0 %v52, 64
  %v68 = vpop.permute.xlu0 %67
  %69 = vrot.lane.b32.xlu0 %v53, 64
  %v70 = vpop.permute.xlu0 %69
  %73 = vst.msk [vmem:[%s4] sm:$0xf] %vm54, %v68
  %74 = vst.msk [vmem:[%s4 + $0x4] sm:$0xf] %vm54, %v70
  // Predicated region
  $region10: #{multi_head_attention.2} parent=0 // pred_check
    _
  $region11: #{multi_head_attention.2} parent=0 // pred_check_branch
    %76 = sbr.rel (0) target = $region13
  $region12: #{multi_head_attention.2} parent=0 // pred_region
    _
  $region13: #{multi_head_attention.2} parent=0 // pred_fallthru
    _
  // Predicated region
  $region14: #{multi_head_attention.2} parent=0 // pred_check
    _
  $region15: #{multi_head_attention.2} parent=0 // pred_check_branch
    %78 = sbr.rel (0) target = $region17
  $region16: #{multi_head_attention.2} parent=0 // pred_region
    _
  $region17: #{multi_head_attention.2} parent=0 // pred_fallthru
    _
  // Predicated region
  $region18: #{multi_head_attention.2} parent=0 // pred_check
    _
  $region19: #{multi_head_attention.2} parent=0 // pred_check_branch
    %80 = sbr.rel (0) target = $region21
  $region20: #{multi_head_attention.2} parent=0 // pred_region
    _
  $region21: #{multi_head_attention.2} parent=0 // pred_fallthru
    _
  // Predicated region
  $region22: #{multi_head_attention.2} parent=0 // pred_check
    _
  $region23: #{multi_head_attention.2} parent=0 // pred_check_branch
    %82 = sbr.rel (0) target = $region25
  $region24: #{multi_head_attention.2} parent=0 // pred_region
    _
  $region25: #{multi_head_attention.2} parent=0 // pred_fallthru
    _
  // Predicated region
  $region26: #{multi_head_attention.2} parent=0 // pred_check
    _
  $region27: #{multi_head_attention.2} parent=0 // pred_check_branch
    %84 = sbr.rel (0) target = $region29
  $region28: #{multi_head_attention.2} parent=0 // pred_region
    _
  $region29: #{multi_head_attention.2} parent=0 // pred_fallthru
    _
  // Predicated region
  $region30: #{multi_head_attention.2} parent=0 // pred_check
    _
  $region31: #{multi_head_attention.2} parent=0 // pred_check_branch
    %86 = sbr.rel (0) target = $region33
  $region32: #{multi_head_attention.2} parent=0 // pred_region
    _
  $region33: #{multi_head_attention.2} parent=0 // pred_fallthru
    _

// kernel: multi_head_attention.3
$region0: #{multi_head_attention.3}
  #allocation0 [shape = 'u32[]', space=smem, size = 0x4, offset = 0x4, fixed_abs, tag = 'smem constant byte address 0x4 - core index']
  #allocation1 [shape = 'u32[72,128]{1,0:T(1,128)}', space=vmem, size = 0x9000, scoped, tag = 'internal scratch']
  #allocation2 [shape = 'bf16[4,8,8]{2,1,0:T(8,128)(2,1)}', space=vmem, size = 0x2000, scoped, tag = 'scratch operand']
  #allocation3 [shape = 'bf16[4,8,8]{2,1,0:T(8,128)(2,1)}', space=vmem, size = 0x2000, scoped, tag = 'scratch operand']
  #allocation4 [shape = 'bf16[4,8,8]{2,1,0:T(8,128)(2,1)}', space=vmem, size = 0x2000, scoped, tag = 'scratch operand']
  #allocation5 [shape = 'f32[4,8,8]{2,1,0:T(8,128)}', space=vmem, size = 0x4000, scoped, tag = 'scratch operand']
  %s0 = inlined_call_operand.vmem [shape: bf16[2,8,32], index: 0, kind: input, shape index: {}]
  %s1 = inlined_call_operand.vmem [shape: bf16[2,8,32], index: 1, kind: input, shape index: {}]
  %s2 = inlined_call_operand.vmem [shape: bf16[2,8,32], index: 2, kind: input, shape index: {}]
  %s3 = inlined_call_operand.hbm [shape: f32[2,8,32], index: 3, kind: output, shape index: {}]
  %s4 = sld [smem:[#allocation0]]
  $region53: #{multi_head_attention.3} parent=0
    _
  %s6 = ssub.s32 1, %s4
  %s7 = scalar_select 0, %s6, %s4
  $region1: #{multi_head_attention.3} parent=0
    #allocation6 [shape = 'u8[8192]{0}', space=vmem, size = 0x2000, scoped, tag = 'output window, operand 0']
    #allocation7 [shape = 's32[2]{0}', space=sflag, size = 0x8, scoped, tag = 'scoped memory for multi_head_attention.3']
    %8 = vsyncpa [#allocation7], 0
    %s9 = scalar_lea.sflag [#allocation7], 1
    %10 = vsyncpa %s9, 0
    loop: start=0, step=1, limit=4
    $region2: #{multi_head_attention.3} parent=1 // loop_pre_header
      _
    $region3: #{multi_head_attention.3} parent=1 // loop_header
      %s12 = sphi 0, %s16
      %p13 = scmp.ge.s32.totalorder %s12, 4
      %s19 = sphi 0, %s38
      %s20 = sphi 0, %s34
      %s21 = sphi 0, %s30
      %s22 = sphi 0, %s19
      %s23 = sphi 0, %s20
      %s24 = sphi 0, %s21
      %s25 = sphi 0, %s22
      %s26 = sphi 0, %s23
      %s27 = sphi 0, %s24
      %s43 = sphi 0, %s45
      %s46 = sphi 0, %s43
      %s47 = sphi 0, %s46
      %s63 = sphi 0, %s47
      %s71 = sphi 0, %s73
      %s74 = sphi 0, %s71
      %s75 = sphi 0, %s74
      %s91 = sphi 0, %s75
      %s99 = sphi 0, %s101
      %s102 = sphi 0, %s99
      %s103 = sphi 0, %s102
      %s119 = sphi 0, %s103
      %s127 = sphi 0, %s129
      %s130 = sphi 0, %s127
      %s131 = sphi 0, %s130
      %s147 = sphi 0, %s131
    $region4: #{multi_head_attention.3} parent=1 // loop_header_branch
      %15 = sbr.rel (%p13) target = $region8
    $region5: #{multi_head_attention.3} parent=1 // loop_body
      %s17 = ssub.s32 %s12, 1
      %s18 = ssub.s32 %s12, 2
      %s28 = sadd.s32 1, %s21
      %p29 = scmp.ge.s32.totalorder %s28, 1
      %s30 = scalar_select %p29, 0, %s28
      %s31 = sadd.s32 1, %s20
      %s32 = scalar_select %p29, %s31, %s20
      %p33 = scmp.ge.s32.totalorder %s32, 1
      %s34 = scalar_select %p33, 0, %s32
      %s35 = sadd.s32 1, %s19
      %s36 = scalar_select %p33, %s35, %s19
      %p37 = scmp.ge.s32.totalorder %s36, 2
      %s38 = scalar_select %p37, 0, %s36
      %s39 = ssub.s32 %s19, %s38
      %s40 = ssub.s32 %s20, %s34
      %s41 = sor.u32 %s39, %s40
      %p42 = scmp.eq.s32.totalorder %s41, 0
      %s44 = sadd.s32 %s43, 1
      %s45 = scalar_select %p42, %s43, %s44
      %p48 = pneg %p42
      %p49 = scmp.eq.s32.totalorder %s12, 1
      %p50 = por %p48, %p49
      %p51 = scmp.ne.s32.totalorder %s43, %s46
      %p52 = scmp.eq.s32.totalorder %s12, 0
      %p53 = por %p51, %p52
      %p54 = scmp.ne.s32.totalorder %s43, %s46
      %p55 = scmp.eq.s32.totalorder %s17, 1
      %p56 = por %p54, %p55
      %p57 = scmp.ne.s32.totalorder %s46, %s47
      %p58 = scmp.eq.s32.totalorder %s17, 0
      %p59 = por %p57, %p58
      %p60 = scmp.ne.s32.totalorder %s46, %s47
      %p61 = scmp.eq.s32.totalorder %s18, 1
      %p62 = por %p60, %p61
      %p64 = scmp.ne.s32.totalorder %s47, %s63
      %p65 = scmp.eq.s32.totalorder %s18, 0
      %p66 = por %p64, %p65
      %s67 = ssub.s32 %s19, %s38
      %s68 = ssub.s32 %s21, %s30
      %s69 = sor.u32 %s67, %s68
      %p70 = scmp.eq.s32.totalorder %s69, 0
      %s72 = sadd.s32 %s71, 1
      %s73 = scalar_select %p70, %s71, %s72
      %p76 = pneg %p70
      %p77 = scmp.eq.s32.totalorder %s12, 1
      %p78 = por %p76, %p77
      %p79 = scmp.ne.s32.totalorder %s71, %s74
      %p80 = scmp.eq.s32.totalorder %s12, 0
      %p81 = por %p79, %p80
      %p82 = scmp.ne.s32.totalorder %s71, %s74
      %p83 = scmp.eq.s32.totalorder %s17, 1
      %p84 = por %p82, %p83
      %p85 = scmp.ne.s32.totalorder %s74, %s75
      %p86 = scmp.eq.s32.totalorder %s17, 0
      %p87 = por %p85, %p86
      %p88 = scmp.ne.s32.totalorder %s74, %s75
      %p89 = scmp.eq.s32.totalorder %s18, 1
      %p90 = por %p88, %p89
      %p92 = scmp.ne.s32.totalorder %s75, %s91
      %p93 = scmp.eq.s32.totalorder %s18, 0
      %p94 = por %p92, %p93
      %s95 = ssub.s32 %s19, %s38
      %s96 = ssub.s32 %s21, %s30
      %s97 = sor.u32 %s95, %s96
      %p98 = scmp.eq.s32.totalorder %s97, 0
      %s100 = sadd.s32 %s99, 1
      %s101 = scalar_select %p98, %s99, %s100
      %p104 = pneg %p98
      %p105 = scmp.eq.s32.totalorder %s12, 1
      %p106 = por %p104, %p105
      %p107 = scmp.ne.s32.totalorder %s99, %s102
      %p108 = scmp.eq.s32.totalorder %s12, 0
      %p109 = por %p107, %p108
      %p110 = scmp.ne.s32.totalorder %s99, %s102
      %p111 = scmp.eq.s32.totalorder %s17, 1
      %p112 = por %p110, %p111
      %p113 = scmp.ne.s32.totalorder %s102, %s103
      %p114 = scmp.eq.s32.totalorder %s17, 0
      %p115 = por %p113, %p114
      %p116 = scmp.ne.s32.totalorder %s102, %s103
      %p117 = scmp.eq.s32.totalorder %s18, 1
      %p118 = por %p116, %p117
      %p120 = scmp.ne.s32.totalorder %s103, %s119
      %p121 = scmp.eq.s32.totalorder %s18, 0
      %p122 = por %p120, %p121
      %s123 = ssub.s32 %s19, %s38
      %s124 = ssub.s32 %s20, %s34
      %s125 = sor.u32 %s123, %s124
      %p126 = scmp.eq.s32.totalorder %s125, 0
      %s128 = sadd.s32 %s127, 1
      %s129 = scalar_select %p126, %s127, %s128
      %p132 = pneg %p126
      %p133 = scmp.eq.s32.totalorder %s12, 1
      %p134 = por %p132, %p133
      %p135 = scmp.ne.s32.totalorder %s127, %s130
      %p136 = scmp.eq.s32.totalorder %s12, 0
      %p137 = por %p135, %p136
      %p138 = scmp.ne.s32.totalorder %s127, %s130
      %p139 = scmp.eq.s32.totalorder %s17, 1
      %p140 = por %p138, %p139
      %p141 = scmp.ne.s32.totalorder %s130, %s131
      %p142 = scmp.eq.s32.totalorder %s17, 0
      %p143 = por %p141, %p142
      %p144 = scmp.ne.s32.totalorder %s130, %s131
      %p145 = scmp.eq.s32.totalorder %s18, 1
      %p146 = por %p144, %p145
      %p148 = scmp.ne.s32.totalorder %s131, %s147
      %p149 = scmp.eq.s32.totalorder %s18, 0
      %p150 = por %p148, %p149
      %p151 = scmp.le.s32.totalorder 1, %s12
      %p152 = scmp.lt.s32.totalorder %s12, 3
      %p153 = pnand %p151, %p152
      %p154 = pneg %p153
      // Predicated region
      $region9: #{multi_head_attention.3} parent=5 // pred_check
        _
      $region10: #{multi_head_attention.3} parent=5 // pred_check_branch
        %156 = sbr.rel (%p153) target = $region12
      $region11: #{multi_head_attention.3} parent=5 // pred_region
        %s157 = ssub.s32 %s12, 1
      $region12: #{multi_head_attention.3} parent=5 // pred_fallthru
        _
      %p158 = scmp.lt.s32.totalorder %s12, 2
      // Predicated region
      $region13: #{multi_head_attention.3} parent=5 // pred_check
        %p159 = pneg %p158
      $region14: #{multi_head_attention.3} parent=5 // pred_check_branch
        %161 = sbr.rel (%p159) target = $region16
      $region15: #{multi_head_attention.3} parent=5 // pred_region
        // Predicated region
        $region17: #{multi_head_attention.3} parent=15 // pred_check
          %p162 = pneg %p53
        $region18: #{multi_head_attention.3} parent=15 // pred_check_branch
          %164 = sbr.rel (%p162) target = $region20
        $region19: #{multi_head_attention.3} parent=15 // pred_region
          %p165 = scmp.lt.s32.totalorder %s19, 1
          %s166 = scalar_select %p165, %s19, 1
          %p167 = scmp.lt.s32.totalorder %s20, 0
          %s168 = scalar_select %p167, %s20, 0
          %s169 = sadd.s32 %s168, %s166
          %s170 = smul.addr %s169, 4
          %s171 = scalar_lea.vmem %s0, %s170
        $region20: #{multi_head_attention.3} parent=15 // pred_fallthru
          _
        // Predicated region
        $region21: #{multi_head_attention.3} parent=15 // pred_check
          %p172 = pneg %p81
        $region22: #{multi_head_attention.3} parent=15 // pred_check_branch
          %174 = sbr.rel (%p172) target = $region24
        $region23: #{multi_head_attention.3} parent=15 // pred_region
          %p175 = scmp.lt.s32.totalorder %s19, 1
          %s176 = scalar_select %p175, %s19, 1
          %p177 = scmp.lt.s32.totalorder %s21, 0
          %s178 = scalar_select %p177, %s21, 0
          %s179 = sadd.s32 %s178, %s176
          %s180 = smul.addr %s179, 4
          %s181 = scalar_lea.vmem %s1, %s180
        $region24: #{multi_head_attention.3} parent=15 // pred_fallthru
          _
        // Predicated region
        $region25: #{multi_head_attention.3} parent=15 // pred_check
          %p182 = pneg %p109
        $region26: #{multi_head_attention.3} parent=15 // pred_check_branch
          %184 = sbr.rel (%p182) target = $region28
        $region27: #{multi_head_attention.3} parent=15 // pred_region
          %p185 = scmp.lt.s32.totalorder %s19, 1
          %s186 = scalar_select %p185, %s19, 1
          %p187 = scmp.lt.s32.totalorder %s21, 0
          %s188 = scalar_select %p187, %s21, 0
          %s189 = sadd.s32 %s188, %s186
          %s190 = smul.addr %s189, 4
          %s191 = scalar_lea.vmem %s2, %s190
        $region28: #{multi_head_attention.3} parent=15 // pred_fallthru
          _
      $region16: #{multi_head_attention.3} parent=5 // pred_fallthru
        _
      %p192 = scmp.le.s32.totalorder 1, %s12
      %p193 = scmp.lt.s32.totalorder %s12, 3
      %p194 = pnand %p192, %p193
      %p195 = pneg %p194
      // Predicated region
      $region29: #{multi_head_attention.3} parent=5 // pred_check
        _
      $region30: #{multi_head_attention.3} parent=5 // pred_check_branch
        %197 = sbr.rel (%p194) target = $region32
      $region31: #{multi_head_attention.3} parent=5 // pred_region
        %s198 = ssub.s32 %s12, 1
        %p199 = scmp.lt.s32.totalorder %s22, 1
        %s200 = scalar_select %p199, %s22, 1
        %p201 = scmp.lt.s32.totalorder %s23, 0
        %s202 = scalar_select %p201, %s23, 0
        %s203 = sadd.s32 %s202, %s200
        %s204 = smul.addr %s203, 4
        %s205 = scalar_lea.vmem %s0, %s204
        %p206 = pneg %p59
        %p207 = pneg %p56
        %p208 = scmp.lt.s32.totalorder %s22, 1
        %s209 = scalar_select %p208, %s22, 1
        %p210 = scmp.lt.s32.totalorder %s24, 0
        %s211 = scalar_select %p210, %s24, 0
        %s212 = sadd.s32 %s211, %s209
        %s213 = smul.addr %s212, 4
        %s214 = scalar_lea.vmem %s1, %s213
        %p215 = pneg %p87
        %p216 = pneg %p84
        %p217 = scmp.lt.s32.totalorder %s22, 1
        %s218 = scalar_select %p217, %s22, 1
        %p219 = scmp.lt.s32.totalorder %s24, 0
        %s220 = scalar_select %p219, %s24, 0
        %s221 = sadd.s32 %s220, %s218
        %s222 = smul.addr %s221, 4
        %s223 = scalar_lea.vmem %s2, %s222
        %p224 = pneg %p115
        %p225 = pneg %p112
        %p226 = pneg %p143
        %p227 = pneg %p140
        %s228 = sand.u32 %s130, 1
        %s229 = scalar_lea.sflag [#allocation7], %s228
        %s230 = sand.u32 %s130, 1
        %s231 = smul.addr %s230, 8
        %s232 = scalar_lea.vmem [#allocation6], %s231
        %p233 = scmp.lt.s32.totalorder %s22, 1
        %s234 = scalar_select %p233, %s22, 1
        %p235 = scmp.lt.s32.totalorder %s23, 0
        %s236 = scalar_select %p235, %s23, 0
        %s237 = sadd.s32 %s236, %s234
        %s238 = smul.addr %s237, 4
        %s239 = scalar_lea.vmem %s0, %s238
        %p240 = scmp.lt.s32.totalorder %s22, 1
        %s241 = scalar_select %p240, %s22, 1
        %p242 = scmp.lt.s32.totalorder %s24, 0
        %s243 = scalar_select %p242, %s24, 0
        %s244 = sadd.s32 %s243, %s241
        %s245 = smul.addr %s244, 4
        %s246 = scalar_lea.vmem %s1, %s245
        %p247 = scmp.lt.s32.totalorder %s22, 1
        %s248 = scalar_select %p247, %s22, 1
        %p249 = scmp.lt.s32.totalorder %s24, 0
        %s250 = scalar_select %p249, %s24, 0
        %s251 = sadd.s32 %s250, %s248
        %s252 = smul.addr %s251, 4
        %s253 = scalar_lea.vmem %s2, %s252
        %p255 = scmp.eq.s32.totalorder %s24, 0
        // Predicated region
        $region33: #{multi_head_attention.3} parent=31 // pred_check
          %p256 = pneg %p255
        $region34: #{multi_head_attention.3} parent=31 // pred_check_branch
          %258 = sbr.rel (%p256) target = $region36
        $region35: #{multi_head_attention.3} parent=31 // pred_region
          %vm259 = vcmask 64512
          %260 = vst.msk [vmem:[#allocation5] sm:$0xff] %vm259, 0.0
          %261 = vst.msk [vmem:[#allocation5 + $0x8] sm:$0xff] %vm259, 0.0
          %262 = vst.msk [vmem:[#allocation5 + $0x10] sm:$0xff] %vm259, 0.0
          %263 = vst.msk [vmem:[#allocation5 + $0x18] sm:$0xff] %vm259, 0.0
          %v264 = vld [vmem:[%s239] sm:$0xf]
          %vm265 = vcmask 60416
          %266 = vst.msk [vmem:[#allocation2] sm:$0xf] %vm265, %v264
          %268 = vrot.lane.b32.xlu0 %v264, 120
          %v269 = vpop.permute.xlu0 %268
          %s271 = scalar_lea.vmem [#allocation2], 4
          %272 = vst.msk [vmem:[%s271] sm:$0xf] %vm265, %v269
          %273 = vrot.lane.b32.xlu0 %v264, 112
          %v274 = vpop.permute.xlu0 %273
          %s276 = scalar_lea.vmem [#allocation2], 8
          %277 = vst.msk [vmem:[%s276] sm:$0xf] %vm265, %v274
          %278 = vrot.lane.b32.xlu0 %v264, 104
          %v279 = vpop.permute.xlu0 %278
          %s281 = scalar_lea.vmem [#allocation2], 12
          %282 = vst.msk [vmem:[%s281] sm:$0xf] %vm265, %v279
        $region36: #{multi_head_attention.3} parent=31 // pred_fallthru
          _
        %v283 = vld [vmem:[%s246] sm:$0xf]
        %v284 = vld [vmem:[%s253] sm:$0xf]
        %vm285 = vcmask 60416
        %286 = vst.msk [vmem:[#allocation3] sm:$0xf] %vm285, %v283
        %287 = vst.msk [vmem:[#allocation4] sm:$0xf] %vm285, %v284
        %289 = vrot.lane.b32.xlu0 %v283, 120
        %v290 = vpop.permute.xlu0 %289
        %s292 = scalar_lea.vmem [#allocation3], 4
        %293 = vst.msk [vmem:[%s292] sm:$0xf] %vm285, %v290
        %295 = vrot.lane.b32.xlu0 %v284, 120
        %v296 = vpop.permute.xlu0 %295
        %s298 = scalar_lea.vmem [#allocation4], 4
        %299 = vst.msk [vmem:[%s298] sm:$0xf] %vm285, %v296
        %300 = vrot.lane.b32.xlu0 %v283, 112
        %v301 = vpop.permute.xlu0 %300
        %s303 = scalar_lea.vmem [#allocation3], 8
        %304 = vst.msk [vmem:[%s303] sm:$0xf] %vm285, %v301
        %305 = vrot.lane.b32.xlu0 %v284, 112
        %v306 = vpop.permute.xlu0 %305
        %s308 = scalar_lea.vmem [#allocation4], 8
        %309 = vst.msk [vmem:[%s308] sm:$0xf] %vm285, %v306
        %310 = vrot.lane.b32.xlu0 %v283, 104
        %v311 = vpop.permute.xlu0 %310
        %s313 = scalar_lea.vmem [#allocation3], 12
        %314 = vst.msk [vmem:[%s313] sm:$0xf] %vm285, %v311
        %315 = vrot.lane.b32.xlu0 %v284, 104
        %v316 = vpop.permute.xlu0 %315
        %s318 = scalar_lea.vmem [#allocation4], 12
        %319 = vst.msk [vmem:[%s318] sm:$0xf] %vm285, %v316
        %v320 = vld [vmem:[#allocation2] sm:$0xf]
        %v321 = vld [vmem:[#allocation2 + $0x4] sm:$0xf]
        %v322 = vld [vmem:[#allocation2 + $0x8] sm:$0xf]
        %v323 = vld [vmem:[#allocation2 + $0xc] sm:$0xf]
        %v324 = vld [vmem:[#allocation3] sm:$0xf]
        %v325 = vld [vmem:[#allocation3 + $0x4] sm:$0xf]
        %v326 = vld [vmem:[#allocation3 + $0x8] sm:$0xf]
        %v327 = vld [vmem:[#allocation3 + $0xc] sm:$0xf]
        %vm328 = vcmask 64512
        %v330 = vsel %vm328, %v320, 0
        %v333 = vsel %vm328, %v324, 0
        %335 = vmatpush.bf16.xpose.msra.mxu0 0
        %336 = vmatpush.bf16.xpose.msra.mxu0 0
        %337 = vmatpush.bf16.xpose.msra.mxu0 0
        %338 = vmatpush.bf16.xpose.msra.mxu0 0
        %339 = vmatpush.bf16.xpose.msra.mxu0 0
        %340 = vmatpush.bf16.xpose.msra.mxu0 0
        %341 = vmatpush.bf16.xpose.msra.mxu0 0
        %342 = vmatpush.bf16.xpose.msra.mxu0 %v333
        %343 = vmatmul.bf16.gmra.mxu0 %v330
        %v344 = vpop.f32.mrf.mxu0
        %v345 = vadd.f32 0.0, %v344
        %v346 = vpop.f32.mrf.mxu0
        %347 = vdwg.mxu0
        %v349 = vsel %vm328, %v321, 0
        %v352 = vsel %vm328, %v325, 0
        %354 = vmatpush.bf16.xpose.msra.mxu0 0
        %355 = vmatpush.bf16.xpose.msra.mxu0 0
        %356 = vmatpush.bf16.xpose.msra.mxu0 0
        %357 = vmatpush.bf16.xpose.msra.mxu0 0
        %358 = vmatpush.bf16.xpose.msra.mxu0 0
        %359 = vmatpush.bf16.xpose.msra.mxu0 0
        %360 = vmatpush.bf16.xpose.msra.mxu0 0
        %361 = vmatpush.bf16.xpose.msra.mxu0 %v352
        %362 = vmatmul.bf16.gmra.mxu0 %v349
        %v363 = vpop.f32.mrf.mxu0
        %v364 = vadd.f32 0.0, %v363
        %v365 = vpop.f32.mrf.mxu0
        %366 = vdwg.mxu0
        %v368 = vsel %vm328, %v322, 0
        %v371 = vsel %vm328, %v326, 0
        %373 = vmatpush.bf16.xpose.msra.mxu0 0
        %374 = vmatpush.bf16.xpose.msra.mxu0 0
        %375 = vmatpush.bf16.xpose.msra.mxu0 0
        %376 = vmatpush.bf16.xpose.msra.mxu0 0
        %377 = vmatpush.bf16.xpose.msra.mxu0 0
        %378 = vmatpush.bf16.xpose.msra.mxu0 0
        %379 = vmatpush.bf16.xpose.msra.mxu0 0
        %380 = vmatpush.bf16.xpose.msra.mxu0 %v371
        %381 = vmatmul.bf16.gmra.mxu0 %v368
        %v382 = vpop.f32.mrf.mxu0
        %v383 = vadd.f32 0.0, %v382
        %v384 = vpop.f32.mrf.mxu0
        %385 = vdwg.mxu0
        %v387 = vsel %vm328, %v323, 0
        %v390 = vsel %vm328, %v327, 0
        %392 = vmatpush.bf16.xpose.msra.mxu0 0
        %393 = vmatpush.bf16.xpose.msra.mxu0 0
        %394 = vmatpush.bf16.xpose.msra.mxu0 0
        %395 = vmatpush.bf16.xpose.msra.mxu0 0
        %396 = vmatpush.bf16.xpose.msra.mxu0 0
        %397 = vmatpush.bf16.xpose.msra.mxu0 0
        %398 = vmatpush.bf16.xpose.msra.mxu0 0
        %399 = vmatpush.bf16.xpose.msra.mxu0 %v390
        %400 = vmatmul.bf16.gmra.mxu0 %v387
        %v401 = vpop.f32.mrf.mxu0
        %v402 = vadd.f32 0.0, %v401
        %v403 = vpop.f32.mrf.mxu0
        %404 = vdwg.mxu0
        %v405 = vsel %vm328, %v345, -inf
        %v406 = vsel %vm328, %v364, -inf
        %v407 = vsel %vm328, %v383, -inf
        %v408 = vsel %vm328, %v402, -inf
        %v409 = vmax.f32 %v405, %v406
        %v410 = vmax.f32 %v407, %v408
        %v411 = vmax.f32 %v409, %v410
        %v412 = vsub.f32 %v345, %v411
        %v413 = vsub.f32 %v364, %v411
        %v414 = vsub.f32 %v383, %v411
        %v415 = vsub.f32 %v402, %v411
        %v416 = vmul.f32 %v412, 1.442695
        %v417 = vpow.pop %v416
        %v418 = vmul.f32 %v413, 1.442695
        %v419 = vpow.pop %v418
        %v420 = vmul.f32 %v414, 1.442695
        %v421 = vpow.pop %v420
        %v422 = vmul.f32 %v415, 1.442695
        %v423 = vpow.pop %v422
        %v424 = vsel %vm328, %v417, 0.0
        %v425 = vsel %vm328, %v419, 0.0
        %v426 = vadd.f32 %v424, %v425
        %v427 = vsel %vm328, %v421, 0.0
        %v428 = vadd.f32 %v426, %v427
        %v429 = vsel %vm328, %v423, 0.0
        %v430 = vadd.f32 %v428, %v429
        %v431 = vrcp.pop %v430
        %v432 = vmul.f32 %v431, 0.17677669
        %v433 = vmul.f32 %v417, %v432
        %v434 = vmul.f32 %v419, %v432
        %v435 = vmul.f32 %v421, %v432
        %v436 = vmul.f32 %v423, %v432
        %v437 = vld [vmem:[#allocation5] sm:$0xff]
        %v438 = vld [vmem:[#allocation5 + $0x8] sm:$0xff]
        %v439 = vld [vmem:[#allocation5 + $0x10] sm:$0xff]
        %v440 = vld [vmem:[#allocation5 + $0x18] sm:$0xff]
        %v441 = vpack.c.bf16 %v433, %v433
        %v442 = vpack.c.bf16 %v434, %v434
        %v443 = vpack.c.bf16 %v435, %v435
        %v444 = vpack.c.bf16 %v436, %v436
        %v445 = vld [vmem:[#allocation4] sm:$0xf]
        %v446 = vld [vmem:[#allocation4 + $0x4] sm:$0xf]
        %v447 = vld [vmem:[#allocation4 + $0x8] sm:$0xf]
        %v448 = vld [vmem:[#allocation4 + $0xc] sm:$0xf]
        %v450 = vsel %vm328, %v441, 0
        %vm452 = vcmask 1043456
        %v454 = vsel %vm452, %v445, 0
        %456 = vmatpush.bf16.msra.mxu0 0
        %457 = vmatpush.bf16.msra.mxu0 0
        %458 = vmatpush.bf16.msra.mxu0 0
        %459 = vmatpush.bf16.msra.mxu0 0
        %460 = vmatpush.bf16.msra.mxu0 0
        %461 = vmatpush.bf16.msra.mxu0 0
        %462 = vmatpush.bf16.msra.mxu0 0
        %463 = vmatpush.bf16.msra.mxu0 %v454
        %464 = vmatmul.bf16.gmra.mxu0 %v450
        %v465 = vpop.f32.mrf.mxu0
        %v466 = vadd.f32 0.0, %v465
        %v467 = vpop.f32.mrf.mxu0
        %468 = vdwg.mxu0
        %v470 = vsel %vm328, %v442, 0
        %v473 = vsel %vm452, %v446, 0
        %475 = vmatpush.bf16.msra.mxu0 0
        %476 = vmatpush.bf16.msra.mxu0 0
        %477 = vmatpush.bf16.msra.mxu0 0
        %478 = vmatpush.bf16.msra.mxu0 0
        %479 = vmatpush.bf16.msra.mxu0 0
        %480 = vmatpush.bf16.msra.mxu0 0
        %481 = vmatpush.bf16.msra.mxu0 0
        %482 = vmatpush.bf16.msra.mxu0 %v473
        %483 = vmatmul.bf16.gmra.mxu0 %v470
        %v484 = vpop.f32.mrf.mxu0
        %v485 = vadd.f32 0.0, %v484
        %v486 = vpop.f32.mrf.mxu0
        %487 = vdwg.mxu0
        %v489 = vsel %vm328, %v443, 0
        %v492 = vsel %vm452, %v447, 0
        %494 = vmatpush.bf16.msra.mxu0 0
        %495 = vmatpush.bf16.msra.mxu0 0
        %496 = vmatpush.bf16.msra.mxu0 0
        %497 = vmatpush.bf16.msra.mxu0 0
        %498 = vmatpush.bf16.msra.mxu0 0
        %499 = vmatpush.bf16.msra.mxu0 0
        %500 = vmatpush.bf16.msra.mxu0 0
        %501 = vmatpush.bf16.msra.mxu0 %v492
        %502 = vmatmul.bf16.gmra.mxu0 %v489
        %v503 = vpop.f32.mrf.mxu0
        %v504 = vadd.f32 0.0, %v503
        %v505 = vpop.f32.mrf.mxu0
        %506 = vdwg.mxu0
        %v508 = vsel %vm328, %v444, 0
        %v511 = vsel %vm452, %v448, 0
        %513 = vmatpush.bf16.msra.mxu0 0
        %514 = vmatpush.bf16.msra.mxu0 0
        %515 = vmatpush.bf16.msra.mxu0 0
        %516 = vmatpush.bf16.msra.mxu0 0
        %517 = vmatpush.bf16.msra.mxu0 0
        %518 = vmatpush.bf16.msra.mxu0 0
        %519 = vmatpush.bf16.msra.mxu0 0
        %520 = vmatpush.bf16.msra.mxu0 %v511
        %521 = vmatmul.bf16.gmra.mxu0 %v508
        %v522 = vpop.f32.mrf.mxu0
        %v523 = vadd.f32 0.0, %v522
        %v524 = vpop.f32.mrf.mxu0
        %525 = vdwg.mxu0
        %v526 = vadd.f32 %v437, %v466
        %v527 = vadd.f32 %v438, %v485
        %v528 = vadd.f32 %v439, %v504
        %v529 = vadd.f32 %v440, %v523
        %530 = vst.msk [vmem:[#allocation5] sm:$0xff] %vm328, %v526
        %531 = vst.msk [vmem:[#allocation5 + $0x8] sm:$0xff] %vm328, %v527
        %532 = vst.msk [vmem:[#allocation5 + $0x10] sm:$0xff] %vm328, %v528
        %533 = vst.msk [vmem:[#allocation5 + $0x18] sm:$0xff] %vm328, %v529
        // Predicated region
        $region37: #{multi_head_attention.3} parent=31 // pred_check
          %p534 = pneg %p255
        $region38: #{multi_head_attention.3} parent=31 // pred_check_branch
          %536 = sbr.rel (%p534) target = $region40
        $region39: #{multi_head_attention.3} parent=31 // pred_region
          %v537 = vld [vmem:[#allocation5] sm:$0xff]
          %538 = vst.msk [vmem:[%s232] sm:$0xff] %vm328, %v537
          %s539 = scalar_lea.vmem [#allocation5], 8
          %v540 = vld [vmem:[%s539] sm:$0xff]
          %542 = vrot.lane.b32.xlu0 %v540, 8
          %v543 = vpop.permute.xlu0 %542
          %vm545 = vcmask 130112
          %546 = vst.msk [vmem:[%s232] sm:$0xff] %vm545, %v543
          %s547 = scalar_lea.vmem [#allocation5], 16
          %v548 = vld [vmem:[%s547] sm:$0xff]
          %550 = vrot.lane.b32.xlu0 %v548, 16
          %v551 = vpop.permute.xlu0 %550
          %vm553 = vcmask 195712
          %554 = vst.msk [vmem:[%s232] sm:$0xff] %vm553, %v551
          %s555 = scalar_lea.vmem [#allocation5], 24
          %v556 = vld [vmem:[%s555] sm:$0xff]
          %558 = vrot.lane.b32.xlu0 %v556, 24
          %v559 = vpop.permute.xlu0 %558
          %vm561 = vcmask 261312
          %562 = vst.msk [vmem:[%s232] sm:$0xff] %vm561, %v559
        $region40: #{multi_head_attention.3} parent=31 // pred_fallthru
          _
        %s563 = sand.u32 %s130, 1
        %s564 = scalar_lea.sflag [#allocation7], %s563
        %s565 = sand.u32 %s130, 1
        %s566 = smul.addr %s565, 8
        %s567 = scalar_lea.vmem [#allocation6], %s566
        // Predicated region
        $region41: #{multi_head_attention.3} parent=31 // pred_check
          %p568 = pneg %p140
        $region42: #{multi_head_attention.3} parent=31 // pred_check_branch
          %570 = sbr.rel (%p568) target = $region44
        $region43: #{multi_head_attention.3} parent=31 // pred_region
          %572 = vsyncadd %s564, 0
          %s573 = sadd.s32 %s23, %s22
          %s574 = smul.addr %s573, 8
          %s575 = scalar_lea.hbm %s3, %s574
          %s577 = sshll.u32 %s567, 4
          %s578 = int_to_ptr.vmem [resolvable:$true] %s577
          %s579 = sshll.u32 %s575, 4
          %s580 = int_to_ptr.hbm [resolvable:$true] %s579
          %582 = dma.vmem_to_hbm [thread:$0]  %s578, 128, %s580, %s564
        $region44: #{multi_head_attention.3} parent=31 // pred_fallthru
          _
      $region32: #{multi_head_attention.3} parent=5 // pred_fallthru
        _
      %p583 = scmp.le.s32.totalorder 2, %s12
      // Predicated region
      $region45: #{multi_head_attention.3} parent=5 // pred_check
        %p584 = pneg %p583
      $region46: #{multi_head_attention.3} parent=5 // pred_check_branch
        %586 = sbr.rel (%p584) target = $region48
      $region47: #{multi_head_attention.3} parent=5 // pred_region
        %s587 = ssub.s32 %s12, 2
        // Predicated region
        $region49: #{multi_head_attention.3} parent=47 // pred_check
          %p588 = pneg %p146
        $region50: #{multi_head_attention.3} parent=47 // pred_check_branch
          %590 = sbr.rel (%p588) target = $region52
        $region51: #{multi_head_attention.3} parent=47 // pred_region
          %s591 = sand.u32 %s131, 1
          %s592 = scalar_lea.sflag [#allocation7], %s591
          %s593 = sand.u32 %s131, 1
          %s594 = smul.addr %s593, 8
          %s595 = scalar_lea.vmem [#allocation6], %s594
          %597 = dma.done %s592, 128
        $region52: #{multi_head_attention.3} parent=47 // pred_fallthru
          _
      $region48: #{multi_head_attention.3} parent=5 // pred_fallthru
        _
    $region6: #{multi_head_attention.3} parent=1 // loop_footer
      %s16 = sadd.s32 1, %s12
    $region7: #{multi_head_attention.3} parent=1 // loop_footer_branch
      %11 = sbr.rel target = $region3
    $region8: #{multi_head_attention.3} parent=1 // loop_exit
      _
    %598 = vsyncpa [#allocation7], 1
    %s599 = scalar_lea.sflag [#allocation7], 1
    %600 = vsyncpa %s599, 1

</llo_original>
